<compile_context>
chip_gen: v7x
topology: tpu7x:2x2x1
jax: 0.10.0
libtpu: 0.0.40
codegen_flags: <defaults>
</compile_context>

<pallas_src>
import jax
import jax.numpy as jnp
from jax.experimental import pallas as pl
from jax.experimental.pallas import tpu as pltpu


def linear_add_relu_kernel(x1_ref, x2_ref, wt_ref, b_ref, o_ref):
    # wt_ref holds W.T, shape (F_in, F_out): standard contraction, no .T on a
    # VMEM tile, so no XLU shuffle.
    acc = jnp.dot(x1_ref[...], wt_ref[...], preferred_element_type=jnp.float32)
    # v2 = (x1 @ W.T) + b + x2 ; v3 = relu(v2). Two VPU adds are free filler
    # under the MXU/DMA; kept in-kernel (not hoisted to the wrapper).
    o_ref[...] = jnp.maximum(acc + (b_ref[...] + x2_ref[...]), 0.0).astype(o_ref.dtype)


def prepare_params(w, b):
    """One-time, init-time layout fix (outside the per-call jit hot path)."""
    wt = w.T                      # (F_in, F_out) — MXU consumes stored layout
    b2d = b.reshape(1, b.shape[0])  # broadcastable bias row
    return wt, b2d


@jax.jit
def model_forward(x1, x2, wt, b2d):
    B, F_in = x1.shape
    F_out = wt.shape[1]
    elem_bytes = jnp.dtype(x1.dtype).itemsize
    bytes_accessed = (
        x1.size + x2.size + wt.size + b2d.size + B * F_out
    ) * elem_bytes
    return pl.pallas_call(
        linear_add_relu_kernel,
        out_shape=jax.ShapeDtypeStruct((B, F_out), x1.dtype),
        # No grid: single invocation, every operand is a whole-array VMEM block.
        in_specs=[
            pl.BlockSpec(memory_space=pltpu.VMEM),   # x1  (B, F_in)
            pl.BlockSpec(memory_space=pltpu.VMEM),   # x2  (B, F_out)
            pl.BlockSpec(memory_space=pltpu.VMEM),   # W.T (F_in, F_out)
            pl.BlockSpec(memory_space=pltpu.VMEM),   # b   (1, F_out)
        ],
        out_specs=pl.BlockSpec(memory_space=pltpu.VMEM),
        # x2 has identical shape/dtype to the result and is consumed by the
        # add: let the writeback reuse its buffer.
        input_output_aliases={1: 0},
        # Advisory: ~128 FLOPs, <400 B traffic — keeps XLA from treating the
        # custom call as opaque/heavy.
        cost_estimate=pl.CostEstimate(
            flops=2 * B * F_in * F_out,
            bytes_accessed=int(bytes_accessed),
            transcendentals=0,
        ),
    )(x1, x2, wt, b2d)


if __name__ == "__main__":
    key = jax.random.PRNGKey(0)
    k1, k2, k3, k4 = jax.random.split(key, 4)

    # Deterministic synthetic parameters (the module's weight override
    # `torch.Tensor([weight], requires_grad=True)` is invalid in PyTorch).
    w = jax.random.normal(k3, (8, 8), dtype=jnp.float32) * 0.1
    b = jax.random.normal(k4, (8,), dtype=jnp.float32) * 0.1

    # Inputs consistent with the module: x1, x2 ~ (1, 8)
    x1 = jax.random.normal(k1, (1, 8), dtype=jnp.float32)
    x2 = jax.random.normal(k2, (1, 8), dtype=jnp.float32)

    # One-time parameter layout fix (init time, not per call).
    wt, b2d = prepare_params(w, b)

    out = model_forward(x1, x2, wt, b2d)
    jax.block_until_ready(out)

    # Cross-check against plain JAX reference.
    ref = jnp.maximum(x1 @ w.T + b + x2, 0.0)
    assert jnp.allclose(out, ref, atol=1e-5), "mismatch vs reference"

    print("KERNEL_OK")
</pallas_src>

<mosaic_0001>
module attributes {stable_mosaic.version = 11 : i64} {
  func.func @linear_add_relu_kernel(%arg0: memref<1x8xf32, #tpu.memory_space<vmem>>, %arg1: memref<1x8xf32, #tpu.memory_space<vmem>>, %arg2: memref<8x8xf32, #tpu.memory_space<vmem>>, %arg3: memref<1x8xf32, #tpu.memory_space<vmem>>, %arg4: memref<1x8xf32, #tpu.memory_space<vmem>>) attributes {dimension_semantics = [], scalar_prefetch = 0 : i64, scratch_operands = 0 : i64, tpu.core_type = #tpu.core_type<tc>} {
    %c0 = arith.constant 0 : index
    %c0_0 = arith.constant 0 : index
    %0 = vector.load %arg0[%c0, %c0_0] : memref<1x8xf32, #tpu.memory_space<vmem>>, vector<1x8xf32>
    %c0_1 = arith.constant 0 : index
    %c0_2 = arith.constant 0 : index
    %1 = vector.load %arg2[%c0_1, %c0_2] : memref<8x8xf32, #tpu.memory_space<vmem>>, vector<8x8xf32>
    %cst = arith.constant dense<0.000000e+00> : vector<1x8xf32>
    %2 = tpu.matmul %0, %1, %cst {dimension_numbers = #tpu.dot_dimension_numbers<[1], [0], [0], [1], [0, 0, 1, 1], [], []>} : vector<1x8xf32>, vector<8x8xf32>, vector<1x8xf32> -> vector<1x8xf32>
    %c0_3 = arith.constant 0 : index
    %c0_4 = arith.constant 0 : index
    %3 = vector.load %arg3[%c0_3, %c0_4] : memref<1x8xf32, #tpu.memory_space<vmem>>, vector<1x8xf32>
    %c0_5 = arith.constant 0 : index
    %c0_6 = arith.constant 0 : index
    %4 = vector.load %arg1[%c0_5, %c0_6] : memref<1x8xf32, #tpu.memory_space<vmem>>, vector<1x8xf32>
    %5 = arith.addf %3, %4 : vector<1x8xf32>
    %6 = arith.addf %2, %5 : vector<1x8xf32>
    %cst_7 = arith.constant 0.000000e+00 : f32
    %7 = vector.broadcast %cst_7 : f32 to vector<1x8xf32>
    %8 = arith.maximumf %6, %7 : vector<1x8xf32>
    %c0_8 = arith.constant 0 : index
    %c0_9 = arith.constant 0 : index
    %9 = vector.load %arg4[%c0_8, %c0_9] : memref<1x8xf32, #tpu.memory_space<vmem>>, vector<1x8xf32>
    tpu.vector_store %arg4[%c0_8, %c0_9], %8 {strides = array<i32>} : memref<1x8xf32, #tpu.memory_space<vmem>>, vector<1x8xf32>,
    return
  }
}

</mosaic_0001>

<llo_original>
// kernel: model_forward.1
$region0: #{model_forward.1}
  #allocation0 [shape = 'u32[]', space=smem, size = 0x4, offset = 0x4, fixed_abs, tag = 'smem constant byte address 0x4 - core index']
  #allocation1 [shape = 'u32[144,128]{1,0:T(1,128)}', space=vmem, size = 0x12000, scoped, tag = 'internal scratch']
  %s0 = inlined_call_operand.vmem [shape: f32[1,8], index: 0, kind: input, shape index: {}]
  %s1 = inlined_call_operand.hbm [shape: f32[1,8], index: 1, kind: input, shape index: {}, may-alias: {1,4}]
  %s2 = inlined_call_operand.hbm [shape: f32[8,8], index: 2, kind: input, shape index: {}]
  %s3 = inlined_call_operand.vmem [shape: f32[1,8], index: 3, kind: input, shape index: {}]
  %s4 = inlined_call_operand.hbm [shape: f32[1,8], index: 4, kind: output, shape index: {}, may-alias: {1,4}]
  %s5 = sld [smem:[#allocation0]]
  $region34: #{model_forward.1} parent=0
    _
  %s7 = ssub.s32 1, %s5
  %s8 = scalar_select 0, %s7, %s5
  $region1: #{model_forward.1} parent=0
    #allocation2 [shape = 'u8[512]{0}', space=vmem, size = 0x400, scoped, tag = 'input window, operand 1, single buffered']
    #allocation3 [shape = 's32[1]{0}', space=sflag, size = 0x4, scoped, tag = 'scoped memory for model_forward.1']
    #allocation4 [shape = 's32[1]{0}', space=sflag, size = 0x4, scoped, tag = 'scoped memory for model_forward.1']
    #allocation5 [shape = 'u8[4096]{0}', space=vmem, size = 0x1000, scoped, tag = 'input window, operand 2, single buffered']
    #allocation6 [shape = 's32[1]{0}', space=sflag, size = 0x4, scoped, tag = 'scoped memory for model_forward.1']
    #allocation7 [shape = 'u8[512]{0}', space=vmem, size = 0x400, scoped, tag = 'output window, operand 0, single buffered']
    %9 = vsyncpa [#allocation3], 0
    %10 = vsyncpa [#allocation6], 0
    %11 = vsyncpa [#allocation4], 0
    // Predicated region
    $region2: #{model_forward.1} parent=1 // pred_check
      _
    $region3: #{model_forward.1} parent=1 // pred_check_branch
      %13 = sbr.rel (0) target = $region5
    $region4: #{model_forward.1} parent=1 // pred_region
      _
    $region5: #{model_forward.1} parent=1 // pred_fallthru
      _
    // Predicated region
    $region6: #{model_forward.1} parent=1 // pred_check
      _
    $region7: #{model_forward.1} parent=1 // pred_check_branch
      %15 = sbr.rel (0) target = $region9
    $region8: #{model_forward.1} parent=1 // pred_region
      %s17 = ssub.s32 16, 16
      %18 = vsyncadd [#allocation3], %s17
      %s20 = sshll.u32 [#allocation2], 4
      %s21 = int_to_ptr.vmem [resolvable:$true] %s20
      %23 = dma.hbm_to_vmem [thread:$0]  %s1, 16, %s21, [#allocation3]
    $region9: #{model_forward.1} parent=1 // pred_fallthru
      _
    // Predicated region
    $region10: #{model_forward.1} parent=1 // pred_check
      _
    $region11: #{model_forward.1} parent=1 // pred_check_branch
      %25 = sbr.rel (0) target = $region13
    $region12: #{model_forward.1} parent=1 // pred_region
      %s27 = ssub.s32 128, 128
      %28 = vsyncadd [#allocation6], %s27
      %s30 = sshll.u32 [#allocation5], 4
      %s31 = int_to_ptr.vmem [resolvable:$true] %s30
      %33 = dma.hbm_to_vmem [thread:$0]  %s2, 128, %s31, [#allocation6]
    $region13: #{model_forward.1} parent=1 // pred_fallthru
      _
    // Predicated region
    $region14: #{model_forward.1} parent=1 // pred_check
      _
    $region15: #{model_forward.1} parent=1 // pred_check_branch
      %35 = sbr.rel (0) target = $region17
    $region16: #{model_forward.1} parent=1 // pred_region
      _
    $region17: #{model_forward.1} parent=1 // pred_fallthru
      _
    // Predicated region
    $region18: #{model_forward.1} parent=1 // pred_check
      _
    $region19: #{model_forward.1} parent=1 // pred_check_branch
      %37 = sbr.rel (0) target = $region21
    $region20: #{model_forward.1} parent=1 // pred_region
      %38 = dma.done [#allocation3], 16
    $region21: #{model_forward.1} parent=1 // pred_fallthru
      _
    // Predicated region
    $region22: #{model_forward.1} parent=1 // pred_check
      _
    $region23: #{model_forward.1} parent=1 // pred_check_branch
      %40 = sbr.rel (0) target = $region25
    $region24: #{model_forward.1} parent=1 // pred_region
      %41 = dma.done [#allocation6], 128
    $region25: #{model_forward.1} parent=1 // pred_fallthru
      _
    %v42 = vld [vmem:[%s0] sm:$0x1]
    %v43 = vld [vmem:[#allocation5] sm:$0xff]
    %v44 = vld [vmem:[%s3] sm:$0x1]
    %v45 = vld [vmem:[#allocation2] sm:$0x1]
    %v46 = vadd.f32 %v44, %v45
    %vm47 = vcmask 64512
    %v49 = vsel %vm47, %v42, 0
    %51 = vmatprep.subr.mxu0 0.0
    %52 = vmatpush1.msra.mxu0 %v43
    %53 = vmatprep.subr.mxu0 0.0
    %54 = vmatpush1.msra.mxu0 0.0
    %55 = vmatprep.subr.mxu0 0.0
    %56 = vmatpush1.msra.mxu0 0.0
    %57 = vmatprep.subr.mxu0 0.0
    %58 = vmatpush1.msra.mxu0 0.0
    %59 = vmatprep.subr.mxu0 0.0
    %60 = vmatpush1.msra.mxu0 0.0
    %61 = vmatprep.subr.mxu0 0.0
    %62 = vmatpush1.msra.mxu0 0.0
    %63 = vmatprep.subr.mxu0 0.0
    %64 = vmatpush1.msra.mxu0 0.0
    %65 = vmatprep.subr.mxu0 0.0
    %66 = vmatpush1.msra.mxu0 0.0
    %67 = vmatprep.subr.mxu0 0.0
    %68 = vmatpush1.msra.mxu0 0.0
    %69 = vmatprep.subr.mxu0 0.0
    %70 = vmatpush1.msra.mxu0 0.0
    %71 = vmatprep.subr.mxu0 0.0
    %72 = vmatpush1.msra.mxu0 0.0
    %73 = vmatprep.subr.mxu0 0.0
    %74 = vmatpush1.msra.mxu0 0.0
    %75 = vmatprep.subr.mxu0 0.0
    %76 = vmatpush1.msra.mxu0 0.0
    %77 = vmatprep.subr.mxu0 0.0
    %78 = vmatpush1.msra.mxu0 0.0
    %79 = vmatprep.subr.mxu0 0.0
    %80 = vmatpush1.msra.mxu0 0.0
    %81 = vmatprep.subr.mxu0 0.0
    %82 = vmatpush1.msra.mxu0 0.0
    %83 = vmatprep.subr.mxu0 0.0
    %84 = vmatpush1.msra.mxu0 0.0
    %85 = vmatprep.subr.mxu0 0.0
    %86 = vmatpush1.msra.mxu0 0.0
    %87 = vmatprep.subr.mxu0 0.0
    %88 = vmatpush1.msra.mxu0 0.0
    %89 = vmatprep.subr.mxu0 0.0
    %90 = vmatpush1.msra.mxu0 0.0
    %91 = vmatprep.subr.mxu0 0.0
    %92 = vmatpush1.msra.mxu0 0.0
    %93 = vmatprep.subr.mxu0 0.0
    %94 = vmatpush1.msra.mxu0 0.0
    %95 = vmatprep.subr.mxu0 0.0
    %96 = vmatpush1.msra.mxu0 0.0
    %97 = vmatprep.subr.mxu0 0.0
    %98 = vmatpush1.msra.mxu0 0.0
    %99 = vmatprep.subr.mxu0 0.0
    %100 = vmatpush1.msra.mxu0 0.0
    %101 = vmatprep.subr.mxu0 0.0
    %102 = vmatpush1.msra.mxu0 0.0
    %103 = vmatprep.subr.mxu0 0.0
    %104 = vmatpush1.msra.mxu0 0.0
    %105 = vmatprep.subr.mxu0 0.0
    %106 = vmatpush1.msra.mxu0 0.0
    %107 = vmatprep.subr.mxu0 0.0
    %108 = vmatpush1.msra.mxu0 0.0
    %109 = vmatprep.subr.mxu0 0.0
    %110 = vmatpush1.msra.mxu0 0.0
    %111 = vmatprep.subr.mxu0 0.0
    %112 = vmatpush1.msra.mxu0 0.0
    %113 = vmatprep.subr.mxu0 0.0
    %114 = vmatpush1.msra.mxu0 0.0
    %115 = vmatprep.mubr.f32.mxu0 0.0
    %116 = vmatmul.mubr.f32.gmra.mrb[0].mxu0 %v49
    %v117 = vpop.f32.mrb[0].mxu0
    %v118 = vadd.f32 %v46, %v117
    %v119 = vpop.f32.mrb[0].mxu0
    %120 = vdwg.mxu0
    %v121 = vmax.f32 %v118, 0.0
    %vm122 = vcmask 57344
    %123 = vst.msk [vmem:[#allocation7] sm:$0x1] %vm122, %v121
    // Predicated region
    $region26: #{model_forward.1} parent=1 // pred_check
      _
    $region27: #{model_forward.1} parent=1 // pred_check_branch
      %125 = sbr.rel (0) target = $region29
    $region28: #{model_forward.1} parent=1 // pred_region
      %s127 = ssub.s32 16, 16
      %128 = vsyncadd [#allocation4], %s127
      %s130 = sshll.u32 [#allocation7], 4
      %s131 = int_to_ptr.vmem [resolvable:$true] %s130
      %133 = dma.vmem_to_hbm [thread:$0]  %s131, 16, %s4, [#allocation4]
    $region29: #{model_forward.1} parent=1 // pred_fallthru
      _
    // Predicated region
    $region30: #{model_forward.1} parent=1 // pred_check
      _
    $region31: #{model_forward.1} parent=1 // pred_check_branch
      %135 = sbr.rel (0) target = $region33
    $region32: #{model_forward.1} parent=1 // pred_region
      %136 = dma.done [#allocation4], 16
    $region33: #{model_forward.1} parent=1 // pred_fallthru
      _
    %137 = vsyncpa [#allocation3], 1
    %138 = vsyncpa [#allocation6], 1
    %139 = vsyncpa [#allocation4], 1

</llo_original>
